<compile_context>
chip_gen: v5e
topology: v5e:2x2
jax: 0.10.0
libtpu: 0.0.40
codegen_flags: <defaults>
</compile_context>

<pallas_src>
import functools

import numpy as np
import jax
import jax.numpy as jnp
from jax.experimental import pallas as pl
from jax.experimental.pallas import tpu as pltpu


def _round_up(x, m):
    return -(-x // m) * m


def _embedding_loss_kernel(numh_ref, x_ref, tag_ref, loss_ref, acc_s, *,
                           n_max, num_kp1, l_vec, pix_total, pc_size,
                           needs_mask):
    """Grid step (b, pc): gather all (keypoint, person) embedding vectors of
    pixel chunk pc with a single packed one-hot matmul and accumulate into
    acc_s; on the last chunk compute batch b's cosine-embedding loss sum."""
    b = pl.program_id(0)
    pc = pl.program_id(1)
    n_chunks = pl.num_programs(1)
    K = num_kp1                      # keypoint maps incl. background channel 0
    L = l_vec
    kk = K - 1
    rows = K * n_max
    eps = 1e-8

    @pl.when(pc == 0)
    def _init():
        acc_s[...] = jnp.zeros_like(acc_s)
        loss_ref[...] = jnp.zeros_like(loss_ref)

    Pc = x_ref.shape[-1]

    # ---- packed gather (masked_select via one MXU-filling matmul) ----------
    # x tile (K, L, Pc) -> (K*L, Pc) is a layout-free merge (L % 8 == 0).
    x = x_ref[0].reshape(K * L, Pc)
    if needs_mask:
        # Tail chunk of a non-lane-aligned pixel axis: zero out-of-bounds lanes
        # so stale VMEM garbage (possibly NaN) cannot reach the MXU accumulate.
        lane = jax.lax.broadcasted_iota(jnp.int32, (1, Pc), 1)
        valid = (pc * pc_size + lane) < pix_total
        x = jnp.where(valid, x, 0.0)

    tag = tag_ref[0].astype(jnp.int32)                           # (K, Pc), cast in VMEM
    person = jax.lax.broadcasted_iota(jnp.int32, (n_max, Pc), 0) + 1
    pieces = []
    for k in range(K):                                           # k=0 block never read
        pieces.append((tag[k:k + 1] == person).astype(x.dtype))  # (n_max, Pc)
    onehot = jnp.concatenate(pieces, axis=0)                     # (K*n_max, Pc)

    # One matmul replaces kk tiny (n_max x L)-output matmuls: the (K*n_max, K*L)
    # output fills the MXU several-fold better; only the diagonal per-keypoint
    # blocks are read back in the finalize step.  Contraction is on the minor
    # (lane) dim of both operands (implicit trans_b), which Mosaic lowers to a
    # native transposed-weight MXU push.
    acc_s[...] += jax.lax.dot_general(onehot, x, (((1,), (1,)), ((), ())),
                                      preferred_element_type=jnp.float32)

    @pl.when(pc == n_chunks - 1)
    def _finalize():
        nh = jnp.minimum(numh_ref[b], n_max)
        acc = acc_s[...]                                          # (K*n_max, K*L)
        # vec[k-1, n, :] = diagonal block (keypoint k, person n); k=0 skipped.
        vecs = jnp.stack(
            [acc[k * n_max:(k + 1) * n_max, k * L:(k + 1) * L]
             for k in range(1, K)], axis=0)                       # (kk, n_max, L)
        mean = jnp.sum(vecs, axis=0) * (1.0 / kk)                 # (n_max, L)

        # Norms via rsqrt (EUP slot) + VPU multiplies.
        mean_sq = jnp.sum(mean * mean, axis=-1, keepdims=True)
        vec_sq = jnp.sum(vecs * vecs, axis=-1, keepdims=True)
        mean_n = mean * jax.lax.rsqrt(jnp.maximum(mean_sq, eps * eps))
        vec_n = vecs * jax.lax.rsqrt(jnp.maximum(vec_sq, eps * eps))

        # positive pairs (label +1):  1 - cos(vec[n, k], mean[n]),  n < numH[b]
        cos_pos = jnp.sum(vec_n * mean_n[None], axis=-1, keepdims=True)
        n_mask = (jax.lax.broadcasted_iota(jnp.int32, (n_max, 1), 0)
                  < nh).astype(jnp.float32)
        pos_loss = jnp.sum((1.0 - cos_pos) * n_mask[None])

        # negative pairs (label -1):  max(0, cos(mean[n1], mean[n2])),  n1 != n2
        cos_neg = jax.lax.dot_general(mean_n, mean_n, (((1,), (1,)), ((), ())),
                                      preferred_element_type=jnp.float32)
        row = jax.lax.broadcasted_iota(jnp.int32, (n_max, n_max), 0)
        col = jax.lax.broadcasted_iota(jnp.int32, (n_max, n_max), 1)
        pair_mask = ((row < nh) & (col < nh) & (row != col)).astype(jnp.float32)
        neg_loss = jnp.sum(jnp.maximum(cos_neg, 0.0) * pair_mask)

        loss_ref[...] += pos_loss + neg_loss


def _choose_pixel_chunk(P, x_tile_bytes, est_vmem, target_x_bytes,
                        vmem_budget, slack):
    """Pick the pixel-chunk size Pc, the chunk count and whether the tail chunk
    needs an in-kernel pixel-validity mask.  Never falls back to an unbounded
    Pc = P tile: if the pixel axis is not lane-aligned and does not fit, a
    lane-aligned Pc with grid = cdiv(P, Pc) and a tail mask is used instead."""
    def fits(Pc, extra=0):
        return (x_tile_bytes(Pc) <= target_x_bytes
                and est_vmem(Pc) + extra + slack <= vmem_budget)

    if P % 128 == 0:
        best = 128
        for c in range(128, P + 1, 128):
            if P % c == 0 and fits(c):
                best = c
        return best, P // best, False

    if fits(P):                         # small / oddly sized pixel axis: 1 chunk
        return P, 1, False

    best = 128
    for c in range(128, _round_up(P, 128) + 1, 128):
        if fits(c, extra=x_tile_bytes(c)):          # masked-x temporary
            best = c
    return best, -(-P // best), True


def embedding_loss(inputs, tags, numH, *, num_keypoints, l_vec, n_max,
                   target_x_bytes=None, vmem_budget=None):
    """Wrapper: free reshapes of NCHW inputs, pixel-chunked Pallas kernel call,
    final pair-count normalization in plain JAX."""
    B, C, H, W = inputs.shape
    K = num_keypoints + 1
    L = l_vec
    P = H * W
    assert C == K * L, (C, K, L)
    # Contiguous reshapes only (no HBM copies, no dtype casts).
    x = inputs.reshape(B, K, L, P)
    tg = tags.reshape(B, K, P)          # no singleton dim -> no 8x sublane padding
    numh = numH.reshape(B).astype(jnp.int32)     # tiny
    kk = K - 1
    rows = K * n_max
    acc_cols = K * L

    # Generation-aware VMEM budget (v7x: 64 MiB -> ~48 MiB; v5e/v6e: 128 -> ~96).
    if vmem_budget is None:
        vmem_cap = 64 << 20
        try:
            vmem_cap = int(getattr(pltpu.get_tpu_info(),
                                   "vmem_capacity_bytes", vmem_cap))
        except Exception:
            pass
        vmem_budget = (vmem_cap * 3) // 4
    if target_x_bytes is None:
        # 8-16 MiB x tiles keep the fixed per-grid-step pipeline overhead
        # <5-10% of the (HBM-bound) step time while staying double-bufferable.
        target_x_bytes = int(min(16 << 20,
                                 max(2 << 20, (vmem_budget - (8 << 20)) // 3)))

    x_item = x.dtype.itemsize
    tag_item = tg.dtype.itemsize

    def x_tile_bytes(Pc):
        return K * _round_up(L, 8) * _round_up(Pc, 128) * x_item

    def est_vmem(Pc):                   # (8,128)-padded VMEM footprint
        x_tile = x_tile_bytes(Pc)
        tag_tile = _round_up(K, 8) * _round_up(Pc, 128) * tag_item
        acc = _round_up(rows, 8) * _round_up(acc_cols, 128) * 4
        onehot = _round_up(rows, 8) * _round_up(Pc, 128) * 4
        return 2 * x_tile + 2 * tag_tile + acc + onehot

    Pc, n_chunks, needs_mask = _choose_pixel_chunk(
        P, x_tile_bytes, est_vmem, target_x_bytes, vmem_budget, slack=6 << 20)

    vmem_limit = int(max(vmem_budget, 32 << 20))

    kern = functools.partial(_embedding_loss_kernel, n_max=n_max, num_kp1=K,
                             l_vec=L, pix_total=P, pc_size=Pc,
                             needs_mask=needs_mask)
    per_batch = pl.pallas_call(
        kern,
        out_shape=jax.ShapeDtypeStruct((B, 1, 1), jnp.float32),
        grid_spec=pltpu.PrefetchScalarGridSpec(
            num_scalar_prefetch=1,
            grid=(B, n_chunks),
            in_specs=[
                pl.BlockSpec((1, K, L, Pc), lambda b, pc, nh: (b, 0, 0, pc)),
                pl.BlockSpec((1, K, Pc), lambda b, pc, nh: (b, 0, pc)),
            ],
            out_specs=pl.BlockSpec((1, 1, 1), lambda b, pc, nh: (b, 0, 0)),
            scratch_shapes=[
                pltpu.VMEM((rows, acc_cols), jnp.float32),   # packed accumulator
            ],
        ),
        compiler_params=pltpu.CompilerParams(
            dimension_semantics=("parallel", "arbitrary"),
            vmem_limit_bytes=vmem_limit),
    )(numh, x, tg)

    # Pair-count normalization outside the kernel (tiny scalar math).
    nh_c = jnp.minimum(numh, n_max).astype(jnp.float32)
    cnt = jnp.sum(nh_c * float(kk) + nh_c * (nh_c - 1.0))
    total = jnp.sum(per_batch)
    return jnp.where(cnt > 0, total / cnt, jnp.float32(0.0))


def _reference_loss(inputs, tags_flat, numH, num_keypoints, l_vec):
    """Pure-numpy restatement of the intended PyTorch forward."""
    B = inputs.shape[0]
    K = num_keypoints + 1
    L = l_vec
    P = tags_flat.shape[-1]
    x = inputs.reshape(B, K, L, P).astype(np.float64)
    eps = 1e-8
    pair_losses = []
    for b in range(B):
        nh = int(numH[b, 0])
        vec = np.zeros((nh, K - 1, L))
        for n in range(nh):
            for ki in range(1, K):
                m = (tags_flat[b, ki] == (n + 1)).astype(np.float64)
                vec[n, ki - 1] = (x[b, ki] * m[None, :]).sum(-1)
        mean = vec.mean(axis=1)
        for n in range(nh):
            for ki in range(K - 1):
                c = vec[n, ki] @ mean[n] / max(
                    np.linalg.norm(vec[n, ki]) * np.linalg.norm(mean[n]), eps)
                pair_losses.append(1.0 - c)
        for n1 in range(nh):
            for n2 in range(nh):
                if n1 != n2:
                    c = mean[n1] @ mean[n2] / max(
                        np.linalg.norm(mean[n1]) * np.linalg.norm(mean[n2]), eps)
                    pair_losses.append(max(0.0, c))
    return float(np.mean(pair_losses)) if pair_losses else 0.0


def _make_case(key, B, num_kp, L, H, W, numH_np):
    """Deterministic inputs with exactly one tagged pixel per (b, person, kp)."""
    K = num_kp + 1
    P = H * W
    inputs = jax.random.normal(key, (B, K * L, H, W), dtype=jnp.float32)
    tags_np = np.zeros((B, K, P), dtype=np.int32)
    for b in range(B):
        for ki in range(1, K):
            for n in range(1, int(numH_np[b, 0]) + 1):
                p = (n * 13 + ki * 5 + b * 3) % P     # one distinct pixel per person
                tags_np[b, ki, p] = n
    tags = jnp.asarray(tags_np.reshape(B, K, H, W))
    return inputs, tags, tags_np


if __name__ == "__main__":
    n_max = 8                        # static upper bound on persons per image
    key = jax.random.PRNGKey(0)
    cases = [
        # tiny single-chunk case (Pc == P, full pixel axis)
        dict(B=2, num_kp=3, L=32, H=8, W=8, numH=[[2], [3]], kwargs={}),
        # multi-chunk, lane-aligned pixel axis (divisor chunking, 2 chunks)
        dict(B=2, num_kp=3, L=32, H=16, W=16, numH=[[3], [1]],
             kwargs=dict(target_x_bytes=4 * 32 * 128 * 4)),
        # multi-chunk with a partial tail chunk (cdiv grid + in-kernel mask)
        dict(B=2, num_kp=3, L=32, H=16, W=20, numH=[[2], [3]],
             kwargs=dict(target_x_bytes=4 * 32 * 128 * 4)),
    ]
    for cfg in cases:
        key, sub = jax.random.split(key)
        B, num_kp, L, H, W = cfg["B"], cfg["num_kp"], cfg["L"], cfg["H"], cfg["W"]
        numH_np = np.array(cfg["numH"], dtype=np.int32)
        inputs, tags, tags_np = _make_case(sub, B, num_kp, L, H, W, numH_np)
        numH = jnp.asarray(numH_np)

        loss = embedding_loss(inputs, tags, numH, num_keypoints=num_kp,
                              l_vec=L, n_max=n_max, **cfg["kwargs"])
        loss = jax.block_until_ready(loss)

        ref = _reference_loss(np.asarray(inputs), tags_np, numH_np, num_kp, L)
        assert np.isfinite(float(loss))
        np.testing.assert_allclose(float(loss), ref, rtol=1e-3, atol=1e-3)

    print("KERNEL_OK")
</pallas_src>

<mosaic_0001>
module attributes {stable_mosaic.version = 11 : i64} {
  func.func @_embedding_loss_kernel(%arg0: i32, %arg1: i32, %arg2: memref<2xi32, #tpu.memory_space<smem>>, %arg3: memref<1x4x32x64xf32, #tpu.memory_space<vmem>>, %arg4: memref<1x4x64xi32, #tpu.memory_space<vmem>>, %arg5: memref<1x1x1xf32, #tpu.memory_space<vmem>>, %arg6: memref<32x128xf32, #tpu.memory_space<vmem>>) attributes {dimension_semantics = [#tpu.dimension_semantics<parallel>, #tpu.dimension_semantics<arbitrary>], iteration_bounds = array<i64: 2, 1>, scalar_prefetch = 1 : i64, scratch_operands = 1 : i64, tpu.core_type = #tpu.core_type<tc>, window_params = [{transform_indices = @transform_0, window_bounds = array<i64: 1, 4, 32, 64>}, {transform_indices = @transform_1, window_bounds = array<i64: 1, 4, 64>}, {transform_indices = @transform_2, window_bounds = array<i64: 1, 1, 1>}]} {
    %c0_i32 = arith.constant 0 : i32
    %0 = arith.cmpi eq, %arg1, %c0_i32 : i32
    %1 = arith.extui %0 : i1 to i32
    %c0_i32_0 = arith.constant 0 : i32
    %2 = arith.cmpi ne, %1, %c0_i32_0 : i32
    scf.if %2 {
      %cst_13 = arith.constant 0.000000e+00 : f32
      %39 = vector.broadcast %cst_13 : f32 to vector<32x128xf32>
      %c0_14 = arith.constant 0 : index
      %c0_15 = arith.constant 0 : index
      %40 = vector.load %arg6[%c0_14, %c0_15] : memref<32x128xf32, #tpu.memory_space<vmem>>, vector<32x128xf32>
      tpu.vector_store %arg6[%c0_14, %c0_15], %39 {strides = array<i32>} : memref<32x128xf32, #tpu.memory_space<vmem>>, vector<32x128xf32>,
      %cst_16 = arith.constant 0.000000e+00 : f32
      %41 = vector.broadcast %cst_16 : f32 to vector<1x1x1xf32>
      %c0_17 = arith.constant 0 : index
      %c0_18 = arith.constant 0 : index
      %c0_19 = arith.constant 0 : index
      %42 = vector.load %arg5[%c0_17, %c0_18, %c0_19] : memref<1x1x1xf32, #tpu.memory_space<vmem>>, vector<1x1x1xf32>
      tpu.vector_store %arg5[%c0_17, %c0_18, %c0_19], %41 {strides = array<i32>} : memref<1x1x1xf32, #tpu.memory_space<vmem>>, vector<1x1x1xf32>,
    } else {
    }
    %c0 = arith.constant 0 : index
    %c0_1 = arith.constant 0 : index
    %c0_2 = arith.constant 0 : index
    %c0_3 = arith.constant 0 : index
    %3 = vector.load %arg3[%c0, %c0_1, %c0_2, %c0_3] : memref<1x4x32x64xf32, #tpu.memory_space<vmem>>, vector<1x4x32x64xf32>
    %4 = vector.shape_cast %3 : vector<1x4x32x64xf32> to vector<4x32x64xf32>
    %5 = vector.shape_cast %4 : vector<4x32x64xf32> to vector<128x64xf32>
    %c0_4 = arith.constant 0 : index
    %c0_5 = arith.constant 0 : index
    %c0_6 = arith.constant 0 : index
    %6 = vector.load %arg4[%c0_4, %c0_5, %c0_6] : memref<1x4x64xi32, #tpu.memory_space<vmem>>, vector<1x4x64xi32>
    %7 = vector.shape_cast %6 : vector<1x4x64xi32> to vector<4x64xi32>
    %8 = tpu.iota {dimensions = array<i32: 0>} : vector<8x64xi32>
    %c1_i32 = arith.constant 1 : i32
    %9 = vector.broadcast %c1_i32 : i32 to vector<8x64xi32>
    %10 = arith.addi %8, %9 : vector<8x64xi32>
    %11 = vector.extract_strided_slice %7 {offsets = [0, 0], sizes = [1, 64], strides = [1, 1]} : vector<4x64xi32> to vector<1x64xi32>
    %12 = vector.broadcast %11 : vector<1x64xi32> to vector<8x64xi32>
    %13 = arith.cmpi eq, %12, %10 : vector<8x64xi32>
    %14 = arith.extui %13 : vector<8x64xi1> to vector<8x64xi32>
    %15 = arith.sitofp %14 : vector<8x64xi32> to vector<8x64xf32>
    %16 = vector.extract_strided_slice %7 {offsets = [1, 0], sizes = [1, 64], strides = [1, 1]} : vector<4x64xi32> to vector<1x64xi32>
    %17 = vector.broadcast %16 : vector<1x64xi32> to vector<8x64xi32>
    %18 = arith.cmpi eq, %17, %10 : vector<8x64xi32>
    %19 = arith.extui %18 : vector<8x64xi1> to vector<8x64xi32>
    %20 = arith.sitofp %19 : vector<8x64xi32> to vector<8x64xf32>
    %21 = vector.extract_strided_slice %7 {offsets = [2, 0], sizes = [1, 64], strides = [1, 1]} : vector<4x64xi32> to vector<1x64xi32>
    %22 = vector.broadcast %21 : vector<1x64xi32> to vector<8x64xi32>
    %23 = arith.cmpi eq, %22, %10 : vector<8x64xi32>
    %24 = arith.extui %23 : vector<8x64xi1> to vector<8x64xi32>
    %25 = arith.sitofp %24 : vector<8x64xi32> to vector<8x64xf32>
    %26 = vector.extract_strided_slice %7 {offsets = [3, 0], sizes = [1, 64], strides = [1, 1]} : vector<4x64xi32> to vector<1x64xi32>
    %27 = vector.broadcast %26 : vector<1x64xi32> to vector<8x64xi32>
    %28 = arith.cmpi eq, %27, %10 : vector<8x64xi32>
    %29 = arith.extui %28 : vector<8x64xi1> to vector<8x64xi32>
    %30 = arith.sitofp %29 : vector<8x64xi32> to vector<8x64xf32>
    %31 = tpu.concatenate %15, %20, %25, %30 in 0 : vector<8x64xf32>, vector<8x64xf32>, vector<8x64xf32>, vector<8x64xf32> -> vector<32x64xf32>
    %c0_7 = arith.constant 0 : index
    %c0_8 = arith.constant 0 : index
    %32 = vector.load %arg6[%c0_7, %c0_8] : memref<32x128xf32, #tpu.memory_space<vmem>>, vector<32x128xf32>
    %cst = arith.constant dense<0.000000e+00> : vector<32x128xf32>
    %33 = tpu.matmul %31, %5, %cst {dimension_numbers = #tpu.dot_dimension_numbers<[1], [1], [0], [0], [0, 0, 1, 0], [], []>} : vector<32x64xf32>, vector<128x64xf32>, vector<32x128xf32> -> vector<32x128xf32>
    %34 = arith.addf %32, %33 : vector<32x128xf32>
    %c0_9 = arith.constant 0 : index
    %c0_10 = arith.constant 0 : index
    %35 = vector.load %arg6[%c0_9, %c0_10] : memref<32x128xf32, #tpu.memory_space<vmem>>, vector<32x128xf32>
    tpu.vector_store %arg6[%c0_9, %c0_10], %34 {strides = array<i32>} : memref<32x128xf32, #tpu.memory_space<vmem>>, vector<32x128xf32>,
    %c0_i32_11 = arith.constant 0 : i32
    %36 = arith.cmpi eq, %arg1, %c0_i32_11 : i32
    %37 = arith.extui %36 : i1 to i32
    %c0_i32_12 = arith.constant 0 : i32
    %38 = arith.cmpi ne, %37, %c0_i32_12 : i32
    scf.if %38 {
      %39 = arith.index_cast %arg0 : i32 to index
      %40 = memref.load %arg2[%39] : memref<2xi32, #tpu.memory_space<smem>>
      %c8_i32 = arith.constant 8 : i32
      %41 = arith.minsi %40, %c8_i32 : i32
      %c0_13 = arith.constant 0 : index
      %c0_14 = arith.constant 0 : index
      %42 = vector.load %arg6[%c0_13, %c0_14] : memref<32x128xf32, #tpu.memory_space<vmem>>, vector<32x128xf32>
      %43 = vector.extract_strided_slice %42 {offsets = [8, 32], sizes = [8, 32], strides = [1, 1]} : vector<32x128xf32> to vector<8x32xf32>
      %44 = vector.extract_strided_slice %42 {offsets = [16, 64], sizes = [8, 32], strides = [1, 1]} : vector<32x128xf32> to vector<8x32xf32>
      %45 = vector.extract_strided_slice %42 {offsets = [24, 96], sizes = [8, 32], strides = [1, 1]} : vector<32x128xf32> to vector<8x32xf32>
      %46 = vector.shape_cast %43 : vector<8x32xf32> to vector<1x8x32xf32>
      %47 = vector.shape_cast %44 : vector<8x32xf32> to vector<1x8x32xf32>
      %48 = vector.shape_cast %45 : vector<8x32xf32> to vector<1x8x32xf32>
      %49 = tpu.concatenate %46, %47, %48 in 0 : vector<1x8x32xf32>, vector<1x8x32xf32>, vector<1x8x32xf32> -> vector<3x8x32xf32>
      %cst_15 = arith.constant dense<0.000000e+00> : vector<8x32xf32>
      %50 = vector.multi_reduction <add>, %49, %cst_15 [0] : vector<3x8x32xf32> to vector<8x32xf32>
      %cst_16 = arith.constant 0.333333343 : f32
      %51 = vector.broadcast %cst_16 : f32 to vector<8x32xf32>
      %52 = arith.mulf %50, %51 : vector<8x32xf32>
      %53 = arith.mulf %52, %52 : vector<8x32xf32>
      %cst_17 = arith.constant dense<0.000000e+00> : vector<8xf32>
      %54 = vector.multi_reduction <add>, %53, %cst_17 [1] : vector<8x32xf32> to vector<8xf32>
      %55 = vector.shape_cast %54 : vector<8xf32> to vector<8x1xf32>
      %56 = arith.mulf %49, %49 : vector<3x8x32xf32>
      %cst_18 = arith.constant dense<0.000000e+00> : vector<3x8xf32>
      %57 = vector.multi_reduction <add>, %56, %cst_18 [2] : vector<3x8x32xf32> to vector<3x8xf32>
      %58 = vector.shape_cast %57 : vector<3x8xf32> to vector<3x8x1xf32>
      %cst_19 = arith.constant 1.000000e-16 : f32
      %59 = vector.broadcast %cst_19 : f32 to vector<8x1xf32>
      %60 = arith.maximumf %55, %59 : vector<8x1xf32>
      %61 = math.rsqrt %60 : vector<8x1xf32>
      %62 = vector.broadcast %61 : vector<8x1xf32> to vector<8x32xf32>
      %63 = arith.mulf %52, %62 : vector<8x32xf32>
      %cst_20 = arith.constant 1.000000e-16 : f32
      %64 = vector.broadcast %cst_20 : f32 to vector<3x8x1xf32>
      %65 = arith.maximumf %58, %64 : vector<3x8x1xf32>
      %66 = math.rsqrt %65 : vector<3x8x1xf32>
      %67 = vector.broadcast %66 : vector<3x8x1xf32> to vector<3x8x32xf32>
      %68 = arith.mulf %49, %67 : vector<3x8x32xf32>
      %69 = vector.shape_cast %63 : vector<8x32xf32> to vector<1x8x32xf32>
      %70 = vector.broadcast %69 : vector<1x8x32xf32> to vector<3x8x32xf32>
      %71 = arith.mulf %68, %70 : vector<3x8x32xf32>
      %cst_21 = arith.constant dense<0.000000e+00> : vector<3x8xf32>
      %72 = vector.multi_reduction <add>, %71, %cst_21 [2] : vector<3x8x32xf32> to vector<3x8xf32>
      %73 = vector.shape_cast %72 : vector<3x8xf32> to vector<3x8x1xf32>
      %74 = tpu.iota {dimensions = array<i32: 0>} : vector<8x1xi32>
      %75 = vector.broadcast %41 : i32 to vector<8x1xi32>
      %76 = arith.cmpi slt, %74, %75 : vector<8x1xi32>
      %77 = arith.extui %76 : vector<8x1xi1> to vector<8x1xi32>
      %78 = arith.sitofp %77 : vector<8x1xi32> to vector<8x1xf32>
      %cst_22 = arith.constant 1.000000e+00 : f32
      %79 = vector.broadcast %cst_22 : f32 to vector<3x8x1xf32>
      %80 = arith.subf %79, %73 : vector<3x8x1xf32>
      %81 = vector.shape_cast %78 : vector<8x1xf32> to vector<1x8x1xf32>
      %82 = vector.broadcast %81 : vector<1x8x1xf32> to vector<3x8x1xf32>
      %83 = arith.mulf %80, %82 : vector<3x8x1xf32>
      %84 = vector.shape_cast %83 : vector<3x8x1xf32> to vector<1x3x8x1xf32>
      %cst_23 = arith.constant dense<0.000000e+00> : vector<1xf32>
      %85 = vector.multi_reduction <add>, %84, %cst_23 [1, 2, 3] : vector<1x3x8x1xf32> to vector<1xf32>
      %86 = vector.shape_cast %85 : vector<1xf32> to vector<1x1x1x1xf32>
      %87 = vector.extract %86[0, 0, 0, 0] : f32 from vector<1x1x1x1xf32>
      %cst_24 = arith.constant dense<0.000000e+00> : vector<8x8xf32>
      %88 = tpu.matmul %63, %63, %cst_24 {dimension_numbers = #tpu.dot_dimension_numbers<[1], [1], [0], [0], [0, 0, 1, 0], [], []>} : vector<8x32xf32>, vector<8x32xf32>, vector<8x8xf32> -> vector<8x8xf32>
      %89 = tpu.iota {dimensions = array<i32: 0>} : vector<8x8xi32>
      %90 = tpu.iota {dimensions = array<i32: 1>} : vector<8x8xi32>
      %91 = vector.broadcast %41 : i32 to vector<8x8xi32>
      %92 = arith.cmpi slt, %89, %91 : vector<8x8xi32>
      %93 = vector.broadcast %41 : i32 to vector<8x8xi32>
      %94 = arith.cmpi slt, %90, %93 : vector<8x8xi32>
      %95 = arith.andi %92, %94 : vector<8x8xi1>
      %96 = arith.cmpi ne, %89, %90 : vector<8x8xi32>
      %97 = arith.andi %95, %96 : vector<8x8xi1>
      %98 = arith.extui %97 : vector<8x8xi1> to vector<8x8xi32>
      %99 = arith.sitofp %98 : vector<8x8xi32> to vector<8x8xf32>
      %cst_25 = arith.constant 0.000000e+00 : f32
      %100 = vector.broadcast %cst_25 : f32 to vector<8x8xf32>
      %101 = arith.maximumf %88, %100 : vector<8x8xf32>
      %102 = arith.mulf %101, %99 : vector<8x8xf32>
      %103 = vector.shape_cast %102 : vector<8x8xf32> to vector<1x8x8xf32>
      %cst_26 = arith.constant dense<0.000000e+00> : vector<1xf32>
      %104 = vector.multi_reduction <add>, %103, %cst_26 [1, 2] : vector<1x8x8xf32> to vector<1xf32>
      %105 = vector.shape_cast %104 : vector<1xf32> to vector<1x1x1xf32>
      %106 = vector.extract %105[0, 0, 0] : f32 from vector<1x1x1xf32>
      %c0_27 = arith.constant 0 : index
      %c0_28 = arith.constant 0 : index
      %c0_29 = arith.constant 0 : index
      %107 = vector.load %arg5[%c0_27, %c0_28, %c0_29] : memref<1x1x1xf32, #tpu.memory_space<vmem>>, vector<1x1x1xf32>
      %108 = arith.addf %87, %106 : f32
      %109 = vector.broadcast %108 : f32 to vector<1x1x1xf32>
      %110 = arith.addf %107, %109 : vector<1x1x1xf32>
      %c0_30 = arith.constant 0 : index
      %c0_31 = arith.constant 0 : index
      %c0_32 = arith.constant 0 : index
      %111 = vector.load %arg5[%c0_30, %c0_31, %c0_32] : memref<1x1x1xf32, #tpu.memory_space<vmem>>, vector<1x1x1xf32>
      tpu.vector_store %arg5[%c0_30, %c0_31, %c0_32], %110 {strides = array<i32>} : memref<1x1x1xf32, #tpu.memory_space<vmem>>, vector<1x1x1xf32>,
    } else {
    }
    return
  }
  func.func @transform_0(%arg0: i32, %arg1: i32, %arg2: memref<2xi32, #tpu.memory_space<smem>>) -> (i32, i32, i32, i32) {
    %c0_i32 = arith.constant 0 : i32
    %c0_i32_0 = arith.constant 0 : i32
    %c0_i32_1 = arith.constant 0 : i32
    return %arg0, %c0_i32, %c0_i32_0, %arg1 : i32, i32, i32, i32
  }
  func.func @transform_1(%arg0: i32, %arg1: i32, %arg2: memref<2xi32, #tpu.memory_space<smem>>) -> (i32, i32, i32) {
    %c0_i32 = arith.constant 0 : i32
    %c0_i32_0 = arith.constant 0 : i32
    return %arg0, %c0_i32, %arg1 : i32, i32, i32
  }
  func.func @transform_2(%arg0: i32, %arg1: i32, %arg2: memref<2xi32, #tpu.memory_space<smem>>) -> (i32, i32, i32) {
    %c0_i32 = arith.constant 0 : i32
    %c0_i32_0 = arith.constant 0 : i32
    %c0_i32_1 = arith.constant 0 : i32
    return %arg0, %c0_i32, %c0_i32_0 : i32, i32, i32
  }
}

</mosaic_0001>

<llo_original>
// kernel: tpu_custom_call.1
$region0: #{tpu_custom_call.1}
  #allocation0 [shape = 'u32[]', space=smem, size = 0x4, offset = 0x4, fixed_abs, tag = 'smem constant byte address 0x4 - core index']
  #allocation1 [shape = 'u32[72,128]{1,0:T(1,128)}', space=vmem, size = 0x9000, scoped, tag = 'internal scratch']
  #allocation2 [shape = 'f32[32,128]{1,0:T(8,128)}', space=vmem, size = 0x4000, scoped, tag = 'scratch operand']
  #allocation3 [shape = 's32[1]{0}', space=sflag, size = 0x4, scoped, tag = 'scoped memory for tpu_custom_call.1']
  #allocation4 [shape = 'u8[512]{0}', space=smem, size = 0x200, scoped, tag = 'prefetched SMEM operand 0']
  %s0 = inlined_call_operand.hbm [shape: s32[2], index: 0, kind: input, shape index: {}]
  %s1 = inlined_call_operand.hbm [shape: f32[2,4,32,64], index: 1, kind: input, shape index: {}]
  %s2 = inlined_call_operand.hbm [shape: s32[2,4,64], index: 2, kind: input, shape index: {}]
  %s3 = inlined_call_operand.vmem [shape: f32[2,1,1], index: 3, kind: output, shape index: {}]
  %s4 = sld [smem:[#allocation0]]
  $region57: #{tpu_custom_call.1} parent=0
    _
  %s6 = ssub.s32 1, %s4
  %s7 = scalar_select 0, %s6, %s4
  %s9 = sshll.u32 %s0, 4
  %s10 = int_to_ptr.hbm [resolvable:$true] %s9
  %12 = dma.hbm_to_smem %s10, 16, [#allocation4], [#allocation3]
  %14 = dma.done [#allocation3], 16
  %15 = sfence
  $region1: #{tpu_custom_call.1} parent=0
    #allocation5 [shape = 'u8[131072]{0}', space=vmem, size = 0x20000, scoped, tag = 'input window, operand 1']
    #allocation6 [shape = 's32[2]{0}', space=sflag, size = 0x8, scoped, tag = 'scoped memory for tpu_custom_call.1']
    #allocation7 [shape = 'u8[4096]{0}', space=vmem, size = 0x1000, scoped, tag = 'input window, operand 2']
    #allocation8 [shape = 's32[2]{0}', space=sflag, size = 0x8, scoped, tag = 'scoped memory for tpu_custom_call.1']
    %16 = vsyncpa [#allocation6], 0
    %s17 = scalar_lea.sflag [#allocation6], 1
    %18 = vsyncpa %s17, 0
    %19 = vsyncpa [#allocation8], 0
    %s20 = scalar_lea.sflag [#allocation8], 1
    %21 = vsyncpa %s20, 0
    loop: start=0, step=1, limit=4
    $region2: #{tpu_custom_call.1} parent=1 // loop_pre_header
      _
    $region3: #{tpu_custom_call.1} parent=1 // loop_header
      %s23 = sphi 0, %s27
      %p24 = scmp.ge.s32.totalorder %s23, 4
      %s30 = sphi 0, %s42
      %s31 = sphi 0, %s38
      %s32 = sphi 0, %s30
      %s33 = sphi 0, %s31
      %s34 = sphi 0, %s32
      %s35 = sphi 0, %s33
      %s47 = sphi 0, %s49
      %s50 = sphi 0, %s47
      %s51 = sphi 0, %s50
      %s67 = sphi 0, %s51
      %s75 = sphi 0, %s77
      %s78 = sphi 0, %s75
      %s79 = sphi 0, %s78
      %s95 = sphi 0, %s79
      %s101 = sphi 0, %s103
      %s104 = sphi 0, %s101
      %s105 = sphi 0, %s104
      %s121 = sphi 0, %s105
    $region4: #{tpu_custom_call.1} parent=1 // loop_header_branch
      %26 = sbr.rel (%p24) target = $region8
    $region5: #{tpu_custom_call.1} parent=1 // loop_body
      %s28 = ssub.s32 %s23, 1
      %s29 = ssub.s32 %s23, 2
      %s36 = sadd.s32 1, %s31
      %p37 = scmp.ge.s32.totalorder %s36, 1
      %s38 = scalar_select %p37, 0, %s36
      %s39 = sadd.s32 1, %s30
      %s40 = scalar_select %p37, %s39, %s30
      %p41 = scmp.ge.s32.totalorder %s40, 2
      %s42 = scalar_select %p41, 0, %s40
      %s43 = ssub.s32 %s30, %s42
      %s44 = ssub.s32 %s31, %s38
      %s45 = sor.u32 %s43, %s44
      %p46 = scmp.eq.s32.totalorder %s45, 0
      %s48 = sadd.s32 %s47, 1
      %s49 = scalar_select %p46, %s47, %s48
      %p52 = pneg %p46
      %p53 = scmp.eq.s32.totalorder %s23, 1
      %p54 = por %p52, %p53
      %p55 = scmp.ne.s32.totalorder %s47, %s50
      %p56 = scmp.eq.s32.totalorder %s23, 0
      %p57 = por %p55, %p56
      %p58 = scmp.ne.s32.totalorder %s47, %s50
      %p59 = scmp.eq.s32.totalorder %s28, 1
      %p60 = por %p58, %p59
      %p61 = scmp.ne.s32.totalorder %s50, %s51
      %p62 = scmp.eq.s32.totalorder %s28, 0
      %p63 = por %p61, %p62
      %p64 = scmp.ne.s32.totalorder %s50, %s51
      %p65 = scmp.eq.s32.totalorder %s29, 1
      %p66 = por %p64, %p65
      %p68 = scmp.ne.s32.totalorder %s51, %s67
      %p69 = scmp.eq.s32.totalorder %s29, 0
      %p70 = por %p68, %p69
      %s71 = ssub.s32 %s30, %s42
      %s72 = ssub.s32 %s31, %s38
      %s73 = sor.u32 %s71, %s72
      %p74 = scmp.eq.s32.totalorder %s73, 0
      %s76 = sadd.s32 %s75, 1
      %s77 = scalar_select %p74, %s75, %s76
      %p80 = pneg %p74
      %p81 = scmp.eq.s32.totalorder %s23, 1
      %p82 = por %p80, %p81
      %p83 = scmp.ne.s32.totalorder %s75, %s78
      %p84 = scmp.eq.s32.totalorder %s23, 0
      %p85 = por %p83, %p84
      %p86 = scmp.ne.s32.totalorder %s75, %s78
      %p87 = scmp.eq.s32.totalorder %s28, 1
      %p88 = por %p86, %p87
      %p89 = scmp.ne.s32.totalorder %s78, %s79
      %p90 = scmp.eq.s32.totalorder %s28, 0
      %p91 = por %p89, %p90
      %p92 = scmp.ne.s32.totalorder %s78, %s79
      %p93 = scmp.eq.s32.totalorder %s29, 1
      %p94 = por %p92, %p93
      %p96 = scmp.ne.s32.totalorder %s79, %s95
      %p97 = scmp.eq.s32.totalorder %s29, 0
      %p98 = por %p96, %p97
      %s99 = ssub.s32 %s30, %s42
      %p100 = scmp.eq.s32.totalorder %s99, 0
      %s102 = sadd.s32 %s101, 1
      %s103 = scalar_select %p100, %s101, %s102
      %p106 = pneg %p100
      %p107 = scmp.eq.s32.totalorder %s23, 1
      %p108 = por %p106, %p107
      %p109 = scmp.ne.s32.totalorder %s101, %s104
      %p110 = scmp.eq.s32.totalorder %s23, 0
      %p111 = por %p109, %p110
      %p112 = scmp.ne.s32.totalorder %s101, %s104
      %p113 = scmp.eq.s32.totalorder %s28, 1
      %p114 = por %p112, %p113
      %p115 = scmp.ne.s32.totalorder %s104, %s105
      %p116 = scmp.eq.s32.totalorder %s28, 0
      %p117 = por %p115, %p116
      %p118 = scmp.ne.s32.totalorder %s104, %s105
      %p119 = scmp.eq.s32.totalorder %s29, 1
      %p120 = por %p118, %p119
      %p122 = scmp.ne.s32.totalorder %s105, %s121
      %p123 = scmp.eq.s32.totalorder %s29, 0
      %p124 = por %p122, %p123
      %p125 = scmp.le.s32.totalorder 1, %s23
      %p126 = scmp.lt.s32.totalorder %s23, 3
      %p127 = pnand %p125, %p126
      %p128 = pneg %p127
      // Predicated region
      $region9: #{tpu_custom_call.1} parent=5 // pred_check
        _
      $region10: #{tpu_custom_call.1} parent=5 // pred_check_branch
        %130 = sbr.rel (%p127) target = $region12
      $region11: #{tpu_custom_call.1} parent=5 // pred_region
        %s131 = ssub.s32 %s23, 1
      $region12: #{tpu_custom_call.1} parent=5 // pred_fallthru
        _
      %p132 = scmp.lt.s32.totalorder %s23, 2
      // Predicated region
      $region13: #{tpu_custom_call.1} parent=5 // pred_check
        %p133 = pneg %p132
      $region14: #{tpu_custom_call.1} parent=5 // pred_check_branch
        %135 = sbr.rel (%p133) target = $region16
      $region15: #{tpu_custom_call.1} parent=5 // pred_region
        // Predicated region
        $region17: #{tpu_custom_call.1} parent=15 // pred_check
          %p136 = pneg %p57
        $region18: #{tpu_custom_call.1} parent=15 // pred_check_branch
          %138 = sbr.rel (%p136) target = $region20
        $region19: #{tpu_custom_call.1} parent=15 // pred_region
          %s139 = sand.u32 %s47, 1
          %s140 = scalar_lea.sflag [#allocation6], %s139
          %s141 = sand.u32 %s47, 1
          %s142 = smul.addr %s141, 128
          %s143 = scalar_lea.vmem [#allocation5], %s142
          %145 = vsyncadd %s140, 0
          %s146 = smul.addr %s30, 16
          %s147 = sadd.s32 %s31, %s146
          %s148 = smul.addr %s147, 8
          %s149 = scalar_lea.hbm %s1, %s148
          %s150 = sshll.u32 %s149, 4
          %s151 = int_to_ptr.hbm [resolvable:$true] %s150
          %s152 = sshll.u32 %s143, 4
          %s153 = int_to_ptr.vmem [resolvable:$true] %s152
          %158 = dma.hbm_to_vmem [thread:$0]  %s151, 2048, %s153, %s140, 128, 128, 8
        $region20: #{tpu_custom_call.1} parent=15 // pred_fallthru
          _
        // Predicated region
        $region21: #{tpu_custom_call.1} parent=15 // pred_check
          %p159 = pneg %p85
        $region22: #{tpu_custom_call.1} parent=15 // pred_check_branch
          %161 = sbr.rel (%p159) target = $region24
        $region23: #{tpu_custom_call.1} parent=15 // pred_region
          %s162 = sand.u32 %s75, 1
          %s163 = scalar_lea.sflag [#allocation8], %s162
          %s164 = sand.u32 %s75, 1
          %s165 = smul.addr %s164, 4
          %s166 = scalar_lea.vmem [#allocation7], %s165
          %168 = vsyncadd %s163, 0
          %s169 = sadd.s32 %s31, %s30
          %s170 = smul.addr %s169, 4
          %s171 = scalar_lea.hbm %s2, %s170
          %s173 = sshll.u32 %s171, 4
          %s174 = int_to_ptr.hbm [resolvable:$true] %s173
          %s175 = sshll.u32 %s166, 4
          %s176 = int_to_ptr.vmem [resolvable:$true] %s175
          %178 = dma.hbm_to_vmem [thread:$0]  %s174, 64, %s176, %s163
        $region24: #{tpu_custom_call.1} parent=15 // pred_fallthru
          _
      $region16: #{tpu_custom_call.1} parent=5 // pred_fallthru
        _
      %p179 = scmp.le.s32.totalorder 1, %s23
      %p180 = scmp.lt.s32.totalorder %s23, 3
      %p181 = pnand %p179, %p180
      %p182 = pneg %p181
      // Predicated region
      $region25: #{tpu_custom_call.1} parent=5 // pred_check
        _
      $region26: #{tpu_custom_call.1} parent=5 // pred_check_branch
        %184 = sbr.rel (%p181) target = $region28
      $region27: #{tpu_custom_call.1} parent=5 // pred_region
        %s185 = ssub.s32 %s23, 1
        %s186 = sand.u32 %s50, 1
        %s187 = scalar_lea.sflag [#allocation6], %s186
        %s188 = sand.u32 %s50, 1
        %s189 = smul.addr %s188, 128
        %s190 = scalar_lea.vmem [#allocation5], %s189
        // Predicated region
        $region29: #{tpu_custom_call.1} parent=27 // pred_check
          %p191 = pneg %p63
        $region30: #{tpu_custom_call.1} parent=27 // pred_check_branch
          %193 = sbr.rel (%p191) target = $region32
        $region31: #{tpu_custom_call.1} parent=27 // pred_region
          %195 = dma.done %s187, 2048
        $region32: #{tpu_custom_call.1} parent=27 // pred_fallthru
          _
        %s196 = sand.u32 %s78, 1
        %s197 = scalar_lea.sflag [#allocation8], %s196
        %s198 = sand.u32 %s78, 1
        %s199 = smul.addr %s198, 4
        %s200 = scalar_lea.vmem [#allocation7], %s199
        // Predicated region
        $region33: #{tpu_custom_call.1} parent=27 // pred_check
          %p201 = pneg %p91
        $region34: #{tpu_custom_call.1} parent=27 // pred_check_branch
          %203 = sbr.rel (%p201) target = $region36
        $region35: #{tpu_custom_call.1} parent=27 // pred_region
          %205 = dma.done %s197, 64
        $region36: #{tpu_custom_call.1} parent=27 // pred_fallthru
          _
        %s206 = sand.u32 %s50, 1
        %s207 = scalar_lea.sflag [#allocation6], %s206
        %s208 = sand.u32 %s50, 1
        %s209 = smul.addr %s208, 128
        %s210 = scalar_lea.vmem [#allocation5], %s209
        %p211 = pneg %p63
        %p212 = pneg %p60
        %s213 = sand.u32 %s78, 1
        %s214 = scalar_lea.sflag [#allocation8], %s213
        %s215 = sand.u32 %s78, 1
        %s216 = smul.addr %s215, 4
        %s217 = scalar_lea.vmem [#allocation7], %s216
        %p218 = pneg %p91
        %p219 = pneg %p88
        %p220 = pneg %p117
        %p221 = pneg %p114
        %p222 = scmp.lt.s32.totalorder %s32, 1
        %s223 = scalar_select %p222, %s32, 1
        %s224 = scalar_lea.vmem %s3, %s223
        %p225 = scmp.lt.s32.totalorder %s32, 1
        %s226 = scalar_select %p225, %s32, 1
        %s227 = scalar_lea.vmem %s3, %s226
        %p228 = scmp.eq.s32.totalorder %s33, 0
        // Predicated region
        $region37: #{tpu_custom_call.1} parent=27 // pred_check
          %p229 = pneg %p228
        $region38: #{tpu_custom_call.1} parent=27 // pred_check_branch
          %231 = sbr.rel (%p229) target = $region40
        $region39: #{tpu_custom_call.1} parent=27 // pred_region
          %232 = vst [vmem:[#allocation2] sm:$0xff] 0.0
          %233 = vst [vmem:[#allocation2 + $0x8] sm:$0xff] 0.0
          %234 = vst [vmem:[#allocation2 + $0x10] sm:$0xff] 0.0
          %235 = vst [vmem:[#allocation2 + $0x18] sm:$0xff] 0.0
          %vm236 = vcmask 0
          %237 = vst.msk [vmem:[%s227] sm:$0x1] %vm236, 0.0
        $region40: #{tpu_custom_call.1} parent=27 // pred_fallthru
          _
        %v238 = vld [vmem:[%s190] sm:$0xff]
        %v239 = vld [vmem:[%s190 + $0x8] sm:$0xff]
        %v240 = vld [vmem:[%s190 + $0x10] sm:$0xff]
        %v241 = vld [vmem:[%s190 + $0x18] sm:$0xff]
        %v242 = vld [vmem:[%s190 + $0x20] sm:$0xff]
        %v243 = vld [vmem:[%s190 + $0x28] sm:$0xff]
        %v244 = vld [vmem:[%s190 + $0x30] sm:$0xff]
        %v245 = vld [vmem:[%s190 + $0x38] sm:$0xff]
        %v246 = vld [vmem:[%s190 + $0x40] sm:$0xff]
        %v247 = vld [vmem:[%s190 + $0x48] sm:$0xff]
        %v248 = vld [vmem:[%s190 + $0x50] sm:$0xff]
        %v249 = vld [vmem:[%s190 + $0x58] sm:$0xff]
        %v250 = vld [vmem:[%s190 + $0x60] sm:$0xff]
        %v251 = vld [vmem:[%s190 + $0x68] sm:$0xff]
        %v252 = vld [vmem:[%s190 + $0x70] sm:$0xff]
        %v253 = vld [vmem:[%s190 + $0x78] sm:$0xff]
        %v254 = vld [vmem:[%s200] sm:$0xf]
        %v255 = vlaneseq
        %v256 = vshrl.u32 %v255, 7
        %v257 = vadd.s32 %v256, 1
        %v258 = vperm.slane %v254, 0
        %vm259 = vcmp.eq.s32.totalorder %v258, %v257
        %v260 = vsel %vm259, 1, 0
        %v261 = vcvt.s32.f32 %v260
        %v262 = vperm.slane %v254, 1
        %vm263 = vcmp.eq.s32.totalorder %v262, %v257
        %v264 = vsel %vm263, 1, 0
        %v265 = vcvt.s32.f32 %v264
        %v266 = vperm.slane %v254, 2
        %vm267 = vcmp.eq.s32.totalorder %v266, %v257
        %v268 = vsel %vm267, 1, 0
        %v269 = vcvt.s32.f32 %v268
        %v270 = vperm.slane %v254, 3
        %vm271 = vcmp.eq.s32.totalorder %v270, %v257
        %v272 = vsel %vm271, 1, 0
        %v273 = vcvt.s32.f32 %v272
        %v274 = vld [vmem:[#allocation2] sm:$0xff]
        %v275 = vld [vmem:[#allocation2 + $0x8] sm:$0xff]
        %v276 = vld [vmem:[#allocation2 + $0x10] sm:$0xff]
        %v277 = vld [vmem:[#allocation2 + $0x18] sm:$0xff]
        %vm278 = vcmask 523264
        %v280 = vsel %vm278, %v261, 0
        %v283 = vsel %vm278, %v265, 0
        %v286 = vsel %vm278, %v269, 0
        %v289 = vsel %vm278, %v273, 0
        %v292 = vsel %vm278, %v238, 0
        %v295 = vsel %vm278, %v239, 0
        %v298 = vsel %vm278, %v240, 0
        %v301 = vsel %vm278, %v241, 0
        %v304 = vsel %vm278, %v242, 0
        %v307 = vsel %vm278, %v243, 0
        %v310 = vsel %vm278, %v244, 0
        %v313 = vsel %vm278, %v245, 0
        %v316 = vsel %vm278, %v246, 0
        %v319 = vsel %vm278, %v247, 0
        %v322 = vsel %vm278, %v248, 0
        %v325 = vsel %vm278, %v249, 0
        %v328 = vsel %vm278, %v250, 0
        %v331 = vsel %vm278, %v251, 0
        %v334 = vsel %vm278, %v252, 0
        %v337 = vsel %vm278, %v253, 0
        %339 = vmatpush.xpose.msra.mxu0 %v337
        %340 = vmatpush.xpose.msra.mxu0 %v334
        %341 = vmatpush.xpose.msra.mxu0 %v331
        %342 = vmatpush.xpose.msra.mxu0 %v328
        %343 = vmatpush.xpose.msra.mxu0 %v325
        %344 = vmatpush.xpose.msra.mxu0 %v322
        %345 = vmatpush.xpose.msra.mxu0 %v319
        %346 = vmatpush.xpose.msra.mxu0 %v316
        %347 = vmatpush.xpose.msra.mxu0 %v313
        %348 = vmatpush.xpose.msra.mxu0 %v310
        %349 = vmatpush.xpose.msra.mxu0 %v307
        %350 = vmatpush.xpose.msra.mxu0 %v304
        %351 = vmatpush.xpose.msra.mxu0 %v301
        %352 = vmatpush.xpose.msra.mxu0 %v298
        %353 = vmatpush.xpose.msra.mxu0 %v295
        %354 = vmatpush.xpose.msra.mxu0 %v292
        %355 = vmatmul.f32.gmra.mxu0 %v280
        %v356 = vpop.f32.mrf.mxu0
        %v357 = vadd.f32 0.0, %v356
        %358 = vmatmul.f32.gmra.mxu0 %v283
        %v359 = vpop.f32.mrf.mxu0
        %v360 = vadd.f32 0.0, %v359
        %361 = vmatmul.f32.gmra.mxu0 %v286
        %v362 = vpop.f32.mrf.mxu0
        %v363 = vadd.f32 0.0, %v362
        %364 = vmatmul.f32.gmra.mxu0 %v289
        %v365 = vpop.f32.mrf.mxu0
        %v366 = vadd.f32 0.0, %v365
        %367 = vdwg.mxu0
        %v368 = vadd.f32 %v274, %v357
        %v369 = vadd.f32 %v275, %v360
        %v370 = vadd.f32 %v276, %v363
        %v371 = vadd.f32 %v277, %v366
        %372 = vst [vmem:[#allocation2] sm:$0xff] %v368
        %373 = vst [vmem:[#allocation2 + $0x8] sm:$0xff] %v369
        %374 = vst [vmem:[#allocation2 + $0x10] sm:$0xff] %v370
        %375 = vst [vmem:[#allocation2 + $0x18] sm:$0xff] %v371
        // Predicated region
        $region41: #{tpu_custom_call.1} parent=27 // pred_check
          %p376 = pneg %p228
        $region42: #{tpu_custom_call.1} parent=27 // pred_check_branch
          %378 = sbr.rel (%p376) target = $region44
        $region43: #{tpu_custom_call.1} parent=27 // pred_region
          %s379 = sld [smem:[#allocation4 + %s32]]
          %p380 = scmp.lt.s32.totalorder %s379, 8
          %s381 = scalar_select %p380, %s379, 8
          %v382 = vld [vmem:[#allocation2 + $0x8] sm:$0xff]
          %v383 = vld [vmem:[#allocation2 + $0x10] sm:$0xff]
          %v384 = vld [vmem:[#allocation2 + $0x18] sm:$0xff]
          %386 = vrot.lane.b32.xlu0 %v383, 96
          %v387 = vpop.permute.xlu0 %386
          %390 = vrot.lane.b32.xlu0 %v384, 64
          %v391 = vpop.permute.xlu0 %390
          %vm393 = vcmask 523520
          %v394 = vsel %vm393, %v382, 0.0
          %v395 = vsel %vm393, %v387, 0.0
          %v396 = vadd.f32 %v394, %v395
          %v397 = vsel %vm393, %v391, 0.0
          %v398 = vadd.f32 %v396, %v397
          %v399 = vmul.f32 %v398, 0.33333334
          %v400 = vmul.f32 %v399, %v399
          %402 = vrot.lane.b32.xlu0 %v400, 96
          %v403 = vpop.permute.xlu0 %402
          %vm405 = vcmask 261120
          %v406 = vsel %vm405, %v403, 0.0
          %407 = vadd.xlane.f32.xlu0 %v406
          %v408 = vpop.xlane.xlu0 %407
          %v409 = vmul.f32 %v382, %v382
          %v410 = vmul.f32 %v387, %v387
          %v411 = vmul.f32 %v391, %v391
          %415 = vrot.lane.b32.xlu0 %v409, 96
          %v416 = vpop.permute.xlu0 %415
          %417 = vrot.lane.b32.xlu0 %v410, 96
          %v418 = vpop.permute.xlu0 %417
          %419 = vrot.lane.b32.xlu0 %v411, 96
          %v420 = vpop.permute.xlu0 %419
          %v424 = vsel %vm405, %v416, 0.0
          %425 = vadd.xlane.f32.xlu0 %v424
          %v426 = vpop.xlane.xlu0 %425
          %v427 = vsel %vm405, %v418, 0.0
          %428 = vadd.xlane.f32.xlu0 %v427
          %v429 = vpop.xlane.xlu0 %428
          %v430 = vsel %vm405, %v420, 0.0
          %431 = vadd.xlane.f32.xlu0 %v430
          %v432 = vpop.xlane.xlu0 %431
          %v433 = vmax.f32 %v408, 1e-16
          %v434 = vrsqrt.pop %v433
          %v435 = vmul.f32 %v434, %v433
          %v436 = vmul.f32 %v435, %v434
          %v437 = vmul.f32 0.5, %v436
          %v438 = vsub.f32 1.5, %v437
          %v439 = vmul.f32 %v434, %v438
          %vm440 = vweird.f32 %v433
          %vm441 = vweird.f32 %v434
          %vm442 = vmor %vm440, %vm441
          %v443 = vsel %vm442, %v434, %v439
          %v444 = vmul.f32 %v399, %v443
          %v445 = vmax.f32 %v426, 1e-16
          %v446 = vmax.f32 %v429, 1e-16
          %v447 = vmax.f32 %v432, 1e-16
          %v448 = vrsqrt.pop %v445
          %v449 = vmul.f32 %v448, %v445
          %v450 = vmul.f32 %v449, %v448
          %v451 = vmul.f32 0.5, %v450
          %v452 = vsub.f32 1.5, %v451
          %v453 = vmul.f32 %v448, %v452
          %vm454 = vweird.f32 %v445
          %vm455 = vweird.f32 %v448
          %vm456 = vmor %vm454, %vm455
          %v457 = vsel %vm456, %v448, %v453
          %v458 = vrsqrt.pop %v446
          %v459 = vmul.f32 %v458, %v446
          %v460 = vmul.f32 %v459, %v458
          %v461 = vmul.f32 0.5, %v460
          %v462 = vsub.f32 1.5, %v461
          %v463 = vmul.f32 %v458, %v462
          %vm464 = vweird.f32 %v446
          %vm465 = vweird.f32 %v458
          %vm466 = vmor %vm464, %vm465
          %v467 = vsel %vm466, %v458, %v463
          %v468 = vrsqrt.pop %v447
          %v469 = vmul.f32 %v468, %v447
          %v470 = vmul.f32 %v469, %v468
          %v471 = vmul.f32 0.5, %v470
          %v472 = vsub.f32 1.5, %v471
          %v473 = vmul.f32 %v468, %v472
          %vm474 = vweird.f32 %v447
          %vm475 = vweird.f32 %v468
          %vm476 = vmor %vm474, %vm475
          %v477 = vsel %vm476, %v468, %v473
          %v478 = vmul.f32 %v382, %v457
          %v479 = vmul.f32 %v387, %v467
          %v480 = vmul.f32 %v391, %v477
          %v481 = vmul.f32 %v478, %v444
          %v482 = vmul.f32 %v479, %v444
          %v483 = vmul.f32 %v480, %v444
          %487 = vrot.lane.b32.xlu0 %v481, 96
          %v488 = vpop.permute.xlu0 %487
          %489 = vrot.lane.b32.xlu0 %v482, 96
          %v490 = vpop.permute.xlu0 %489
          %491 = vrot.lane.b32.xlu0 %v483, 96
          %v492 = vpop.permute.xlu0 %491
          %v496 = vsel %vm405, %v488, 0.0
          %497 = vadd.xlane.f32.xlu0 %v496
          %v498 = vpop.xlane.xlu0 %497
          %v499 = vsel %vm405, %v490, 0.0
          %500 = vadd.xlane.f32.xlu0 %v499
          %v501 = vpop.xlane.xlu0 %500
          %v502 = vsel %vm405, %v492, 0.0
          %503 = vadd.xlane.f32.xlu0 %v502
          %v504 = vpop.xlane.xlu0 %503
          %v505 = vstv %s381
          %vm506 = vcmp.lt.s32.totalorder %v256, %v505
          %v507 = vsel %vm506, 1, 0
          %v508 = vcvt.s32.f32 %v507
          %v509 = vsub.f32 1.0, %v498
          %v510 = vsub.f32 1.0, %v501
          %v511 = vsub.f32 1.0, %v504
          %v512 = vmul.f32 %v509, %v508
          %v513 = vmul.f32 %v510, %v508
          %v514 = vmul.f32 %v511, %v508
          %vm515 = vcmask 7168
          %v516 = vsel %vm515, %v512, 0.0
          %v517 = vsel %vm515, %v513, 0.0
          %v518 = vadd.f32 %v516, %v517
          %v519 = vsel %vm515, %v514, 0.0
          %v520 = vadd.f32 %v518, %v519
          %521 = vadd.xlane.f32.xlu0 %v520
          %v522 = vpop.xlane.xlu0 %521
          %v523 = vrot.slane %v522, 4
          %v524 = vadd.f32 %v522, %v523
          %v525 = vrot.slane %v524, 2
          %v526 = vadd.f32 %v524, %v525
          %v527 = vrot.slane %v526, 1
          %v528 = vadd.f32 %v526, %v527
          %s529 = vtos %v528
          %531 = vrot.lane.b32.xlu0 %v444, 96
          %v532 = vpop.permute.xlu0 %531
          %v533 = vsel %vm405, %v532, 0
          %535 = vmatpush.xpose.msra.mxu0 0.0
          %536 = vmatpush.xpose.msra.mxu0 0.0
          %537 = vmatpush.xpose.msra.mxu0 0.0
          %538 = vmatpush.xpose.msra.mxu0 0.0
          %539 = vmatpush.xpose.msra.mxu0 0.0
          %540 = vmatpush.xpose.msra.mxu0 0.0
          %541 = vmatpush.xpose.msra.mxu0 0.0
          %542 = vmatpush.xpose.msra.mxu0 0.0
          %543 = vmatpush.xpose.msra.mxu0 0.0
          %544 = vmatpush.xpose.msra.mxu0 0.0
          %545 = vmatpush.xpose.msra.mxu0 0.0
          %546 = vmatpush.xpose.msra.mxu0 0.0
          %547 = vmatpush.xpose.msra.mxu0 0.0
          %548 = vmatpush.xpose.msra.mxu0 0.0
          %549 = vmatpush.xpose.msra.mxu0 0.0
          %550 = vmatpush.xpose.msra.mxu0 %v533
          %551 = vmatmul.f32.gmra.mxu0 %v533
          %v552 = vpop.f32.mrf.mxu0
          %v553 = vadd.f32 0.0, %v552
          %554 = vdwg.mxu0
          %v555 = vlaneseq
          %v556 = vand.u32 %v555, 127
          %vm557 = vcmp.lt.s32.totalorder %v556, %v505
          %vm558 = vmand %vm506, %vm557
          %vm559 = vcmp.ne.s32.totalorder %v256, %v556
          %vm560 = vmand %vm558, %vm559
          %v561 = vsel %vm560, 1, 0
          %v562 = vcvt.s32.f32 %v561
          %v563 = vmax.f32 %v553, 0.0
          %v564 = vmul.f32 %v563, %v562
          %vm565 = vcmask 64512
          %v566 = vsel %vm565, %v564, 0.0
          %567 = vadd.xlane.f32.xlu0 %v566
          %v568 = vpop.xlane.xlu0 %567
          %v569 = vrot.slane %v568, 4
          %v570 = vadd.f32 %v568, %v569
          %v571 = vrot.slane %v570, 2
          %v572 = vadd.f32 %v570, %v571
          %v573 = vrot.slane %v572, 1
          %v574 = vadd.f32 %v572, %v573
          %s575 = vtos %v574
          %v576 = vld [vmem:[%s227] sm:$0x1]
          %s577 = sadd.f32 %s529, %s575
          %v578 = vstv %s577
          %v579 = vadd.f32 %v576, %v578
          %vm580 = vcmask 0
          %581 = vst.msk [vmem:[%s227] sm:$0x1] %vm580, %v579
        $region44: #{tpu_custom_call.1} parent=27 // pred_fallthru
          _
        %p582 = scmp.lt.s32.totalorder %s32, 1
        %s583 = scalar_select %p582, %s32, 1
        %s584 = scalar_lea.vmem %s3, %s583
        // Predicated region
        $region45: #{tpu_custom_call.1} parent=27 // pred_check
          %p585 = pneg %p114
        $region46: #{tpu_custom_call.1} parent=27 // pred_check_branch
          %587 = sbr.rel (%p585) target = $region48
        $region47: #{tpu_custom_call.1} parent=27 // pred_region
          _
        $region48: #{tpu_custom_call.1} parent=27 // pred_fallthru
          _
      $region28: #{tpu_custom_call.1} parent=5 // pred_fallthru
        _
      %p588 = scmp.le.s32.totalorder 2, %s23
      // Predicated region
      $region49: #{tpu_custom_call.1} parent=5 // pred_check
        %p589 = pneg %p588
      $region50: #{tpu_custom_call.1} parent=5 // pred_check_branch
        %591 = sbr.rel (%p589) target = $region52
      $region51: #{tpu_custom_call.1} parent=5 // pred_region
        %s592 = ssub.s32 %s23, 2
        // Predicated region
        $region53: #{tpu_custom_call.1} parent=51 // pred_check
          %p593 = pneg %p120
        $region54: #{tpu_custom_call.1} parent=51 // pred_check_branch
          %595 = sbr.rel (%p593) target = $region56
        $region55: #{tpu_custom_call.1} parent=51 // pred_region
          %p596 = scmp.lt.s32.totalorder %s34, 1
          %s597 = scalar_select %p596, %s34, 1
          %s598 = scalar_lea.vmem %s3, %s597
        $region56: #{tpu_custom_call.1} parent=51 // pred_fallthru
          _
      $region52: #{tpu_custom_call.1} parent=5 // pred_fallthru
        _
    $region6: #{tpu_custom_call.1} parent=1 // loop_footer
      %s27 = sadd.s32 1, %s23
    $region7: #{tpu_custom_call.1} parent=1 // loop_footer_branch
      %22 = sbr.rel target = $region3
    $region8: #{tpu_custom_call.1} parent=1 // loop_exit
      _
    %599 = vsyncpa [#allocation6], 1
    %s600 = scalar_lea.sflag [#allocation6], 1
    %601 = vsyncpa %s600, 1
    %602 = vsyncpa [#allocation8], 1
    %s603 = scalar_lea.sflag [#allocation8], 1
    %604 = vsyncpa %s603, 1

</llo_original>
